<compile_context>
chip_gen: v5e
topology: v5e:2x2
jax: 0.10.0
libtpu: 0.0.40
codegen_flags: <defaults>
</compile_context>

<pallas_src>
import functools

import jax
import jax.numpy as jnp
from jax import lax
from jax.experimental import pallas as pl
from jax.experimental.pallas import tpu as pltpu

EPS = 1e-5  # PyTorch nn.LayerNorm default


def _residual_layernorm_kernel(x_ref, res_ref, gamma_ref, beta_ref, o_ref, *, d_model):
    # dropout in eval mode == identity
    h = x_ref[...].astype(jnp.float32) + res_ref[...].astype(jnp.float32)

    inv_d = jnp.float32(1.0 / d_model)
    mean = jnp.sum(h, axis=-1, keepdims=True) * inv_d
    c = h - mean
    var = jnp.sum(c * c, axis=-1, keepdims=True) * inv_d
    inv = lax.rsqrt(var + jnp.float32(EPS))

    g = gamma_ref[...]  # (1, D), already float32
    b = beta_ref[...]   # (1, D), already float32
    o_ref[...] = (c * inv * g + b).astype(o_ref.dtype)


def _round_up(n, m):
    return ((n + m - 1) // m) * m


def _vmem_capacity_bytes():
    try:
        return int(pltpu.get_tpu_info().vmem_capacity_bytes)
    except Exception:
        return 64 << 20  # conservative: v7x has 64 MiB per TensorCore


@functools.partial(jax.jit, static_argnames=("target_block_bytes",))
def residual_layer_norm(x, residual, gamma, beta, target_block_bytes=2 << 20):
    """x, residual: (B, S, D); gamma, beta: (D,). Returns (B, S, D)."""
    B, S, D = x.shape
    rows = B * S
    dtype = x.dtype
    itemsize = jnp.dtype(dtype).itemsize

    # Row-tile alignment: 8 sublanes for 4-byte dtypes, 16 for 2-byte (bf16 packing).
    row_align = 16 if itemsize == 2 else 8

    # Byte-targeted row tile (~target_block_bytes per stream), clamped to the
    # (aligned) total row count so tiny inputs get a single block.
    bytes_per_row = D * itemsize
    rt = max(row_align, _round_up(max(1, target_block_bytes // bytes_per_row), row_align))
    rt = min(rt, _round_up(rows, row_align))

    # VMEM working set: 3 streams (x, res, out) x 2 pipeline buffers of the IO
    # block, plus ~3 f32-sized blocks of kernel-body intermediates
    # (h, centered h, pre-cast output).
    def _work_bytes(rt_):
        io_block = rt_ * D * itemsize
        f32_block = rt_ * D * 4
        return 3 * 2 * io_block + 3 * f32_block

    vmem_cap = _vmem_capacity_bytes()
    budget = vmem_cap - (8 << 20)  # leave headroom for Mosaic internals
    while rt > row_align and _work_bytes(rt) > budget:
        rt = max(row_align, _round_up(rt // 2, row_align))

    grid = (pl.cdiv(rows, rt),)  # ragged last block; no wrapper-side padding

    param_bytes = 2 * D * 4  # f32 gamma + beta residents
    vmem_bytes = _work_bytes(rt) + param_bytes + (2 << 20)
    vmem_bytes = int(min(max(vmem_bytes, 4 << 20), budget))

    x2 = x.reshape(rows, D)
    r2 = residual.reshape(rows, D)
    g2 = gamma.astype(jnp.float32).reshape(1, D)
    b2 = beta.astype(jnp.float32).reshape(1, D)

    kernel = functools.partial(_residual_layernorm_kernel, d_model=D)

    out = pl.pallas_call(
        kernel,
        out_shape=jax.ShapeDtypeStruct((rows, D), dtype),
        grid_spec=pltpu.PrefetchScalarGridSpec(
            num_scalar_prefetch=0,
            grid=grid,
            in_specs=[
                pl.BlockSpec((rt, D), lambda i: (i, 0)),
                pl.BlockSpec((rt, D), lambda i: (i, 0)),
                # gamma/beta: whole-array VMEM residents (no per-step tiling/DMA).
                pl.BlockSpec(memory_space=pltpu.MemorySpace.VMEM),
                pl.BlockSpec(memory_space=pltpu.MemorySpace.VMEM),
            ],
            out_specs=pl.BlockSpec((rt, D), lambda i: (i, 0)),
        ),
        compiler_params=pltpu.CompilerParams(
            dimension_semantics=("parallel",),  # megacore sharding on v7x
            vmem_limit_bytes=vmem_bytes,
        ),
    )(x2, r2, g2, b2)

    return out.reshape(B, S, D)


def _reference(x, residual, gamma, beta):
    h = x + residual
    mean = jnp.mean(h, axis=-1, keepdims=True)
    var = jnp.mean((h - mean) ** 2, axis=-1, keepdims=True)
    return (h - mean) / jnp.sqrt(var + EPS) * gamma + beta


if __name__ == "__main__":
    key = jax.random.PRNGKey(0)

    # Main test: batch=2, seq=8, d_model=32 (single block).
    B, S, D = 2, 8, 32
    kx, kr = jax.random.split(key)
    x = jax.random.normal(kx, (B, S, D), dtype=jnp.float32)
    residual = jax.random.normal(kr, (B, S, D), dtype=jnp.float32)
    gamma = jnp.ones((D,), dtype=jnp.float32)   # nn.LayerNorm default init
    beta = jnp.zeros((D,), dtype=jnp.float32)

    out = residual_layer_norm(x, residual, gamma, beta)
    out = jax.block_until_ready(out)
    ref = _reference(x, residual, gamma, beta)
    assert out.shape == (B, S, D)
    assert jnp.allclose(out, ref, atol=1e-4, rtol=1e-4), "mismatch vs reference"

    # Ragged-grid test: rows (=15) not a multiple of the row tile, odd d_model.
    B2, S2, D2 = 3, 5, 48
    k2x, k2r = jax.random.split(jax.random.PRNGKey(1))
    x2 = jax.random.normal(k2x, (B2, S2, D2), dtype=jnp.float32)
    r2 = jax.random.normal(k2r, (B2, S2, D2), dtype=jnp.float32)
    g2 = jnp.ones((D2,), dtype=jnp.float32)
    b2 = jnp.zeros((D2,), dtype=jnp.float32)
    out2 = residual_layer_norm(x2, r2, g2, b2, target_block_bytes=1024)
    out2 = jax.block_until_ready(out2)
    ref2 = _reference(x2, r2, g2, b2)
    assert out2.shape == (B2, S2, D2)
    assert jnp.allclose(out2, ref2, atol=1e-4, rtol=1e-4), "ragged-grid mismatch"

    print("KERNEL_OK")
</pallas_src>

<mosaic_0001>
module attributes {stable_mosaic.version = 11 : i64} {
  func.func @_residual_layernorm_kernel(%arg0: i32, %arg1: memref<16x32xf32, #tpu.memory_space<vmem>>, %arg2: memref<16x32xf32, #tpu.memory_space<vmem>>, %arg3: memref<1x32xf32, #tpu.memory_space<vmem>>, %arg4: memref<1x32xf32, #tpu.memory_space<vmem>>, %arg5: memref<16x32xf32, #tpu.memory_space<vmem>>) attributes {dimension_semantics = [#tpu.dimension_semantics<parallel>], iteration_bounds = array<i64: 1>, scalar_prefetch = 0 : i64, scratch_operands = 0 : i64, tpu.core_type = #tpu.core_type<tc>, window_params = [{transform_indices = @transform_0, window_bounds = array<i64: 16, 32>}, {transform_indices = @transform_1, window_bounds = array<i64: 16, 32>}, {pipeline_mode = #tpu.pipeline_mode<synchronous>, transform_indices = @transform_2, window_bounds = array<i64: 1, 32>}, {pipeline_mode = #tpu.pipeline_mode<synchronous>, transform_indices = @transform_3, window_bounds = array<i64: 1, 32>}, {transform_indices = @transform_4, window_bounds = array<i64: 16, 32>}]} {
    %c0 = arith.constant 0 : index
    %c0_0 = arith.constant 0 : index
    %0 = vector.load %arg1[%c0, %c0_0] : memref<16x32xf32, #tpu.memory_space<vmem>>, vector<16x32xf32>
    %c0_1 = arith.constant 0 : index
    %c0_2 = arith.constant 0 : index
    %1 = vector.load %arg2[%c0_1, %c0_2] : memref<16x32xf32, #tpu.memory_space<vmem>>, vector<16x32xf32>
    %2 = arith.addf %0, %1 : vector<16x32xf32>
    %cst = arith.constant dense<0.000000e+00> : vector<16xf32>
    %3 = vector.multi_reduction <add>, %2, %cst [1] : vector<16x32xf32> to vector<16xf32>
    %4 = vector.shape_cast %3 : vector<16xf32> to vector<16x1xf32>
    %cst_3 = arith.constant 3.125000e-02 : f32
    %5 = vector.broadcast %cst_3 : f32 to vector<16x1xf32>
    %6 = arith.mulf %4, %5 : vector<16x1xf32>
    %7 = vector.broadcast %6 : vector<16x1xf32> to vector<16x32xf32>
    %8 = arith.subf %2, %7 : vector<16x32xf32>
    %9 = arith.mulf %8, %8 : vector<16x32xf32>
    %cst_4 = arith.constant dense<0.000000e+00> : vector<16xf32>
    %10 = vector.multi_reduction <add>, %9, %cst_4 [1] : vector<16x32xf32> to vector<16xf32>
    %11 = vector.shape_cast %10 : vector<16xf32> to vector<16x1xf32>
    %cst_5 = arith.constant 3.125000e-02 : f32
    %12 = vector.broadcast %cst_5 : f32 to vector<16x1xf32>
    %13 = arith.mulf %11, %12 : vector<16x1xf32>
    %cst_6 = arith.constant 9.99999974E-6 : f32
    %14 = vector.broadcast %cst_6 : f32 to vector<16x1xf32>
    %15 = arith.addf %13, %14 : vector<16x1xf32>
    %16 = math.rsqrt %15 : vector<16x1xf32>
    %c0_7 = arith.constant 0 : index
    %c0_8 = arith.constant 0 : index
    %17 = vector.load %arg3[%c0_7, %c0_8] : memref<1x32xf32, #tpu.memory_space<vmem>>, vector<1x32xf32>
    %c0_9 = arith.constant 0 : index
    %c0_10 = arith.constant 0 : index
    %18 = vector.load %arg4[%c0_9, %c0_10] : memref<1x32xf32, #tpu.memory_space<vmem>>, vector<1x32xf32>
    %19 = vector.broadcast %16 : vector<16x1xf32> to vector<16x32xf32>
    %20 = arith.mulf %8, %19 : vector<16x32xf32>
    %21 = vector.broadcast %17 : vector<1x32xf32> to vector<16x32xf32>
    %22 = arith.mulf %20, %21 : vector<16x32xf32>
    %23 = vector.broadcast %18 : vector<1x32xf32> to vector<16x32xf32>
    %24 = arith.addf %22, %23 : vector<16x32xf32>
    %c0_11 = arith.constant 0 : index
    %c0_12 = arith.constant 0 : index
    %25 = vector.load %arg5[%c0_11, %c0_12] : memref<16x32xf32, #tpu.memory_space<vmem>>, vector<16x32xf32>
    tpu.vector_store %arg5[%c0_11, %c0_12], %24 {strides = array<i32>} : memref<16x32xf32, #tpu.memory_space<vmem>>, vector<16x32xf32>,
    return
  }
  func.func @transform_0(%arg0: i32) -> (i32, i32) {
    %c0_i32 = arith.constant 0 : i32
    %c0_i32_0 = arith.constant 0 : i32
    return %arg0, %c0_i32 : i32, i32
  }
  func.func @transform_1(%arg0: i32) -> (i32, i32) {
    %c0_i32 = arith.constant 0 : i32
    %c0_i32_0 = arith.constant 0 : i32
    return %arg0, %c0_i32 : i32, i32
  }
  func.func @transform_2(%arg0: i32) -> (i32, i32) {
    %c0_i32 = arith.constant 0 : i32
    %c0_i32_0 = arith.constant 0 : i32
    %c0_i32_1 = arith.constant 0 : i32
    return %c0_i32, %c0_i32_0 : i32, i32
  }
  func.func @transform_3(%arg0: i32) -> (i32, i32) {
    %c0_i32 = arith.constant 0 : i32
    %c0_i32_0 = arith.constant 0 : i32
    %c0_i32_1 = arith.constant 0 : i32
    return %c0_i32, %c0_i32_0 : i32, i32
  }
  func.func @transform_4(%arg0: i32) -> (i32, i32) {
    %c0_i32 = arith.constant 0 : i32
    %c0_i32_0 = arith.constant 0 : i32
    return %arg0, %c0_i32 : i32, i32
  }
}

</mosaic_0001>

<llo_original>
// kernel: residual_layer_norm.1
$region0: #{residual_layer_norm.1}
  #allocation0 [shape = 'u32[]', space=smem, size = 0x4, offset = 0x4, fixed_abs, tag = 'smem constant byte address 0x4 - core index']
  #allocation1 [shape = 'u32[72,128]{1,0:T(1,128)}', space=vmem, size = 0x9000, scoped, tag = 'internal scratch']
  %s0 = inlined_call_operand.hbm [shape: f32[16,32], index: 0, kind: input, shape index: {}]
  %s1 = inlined_call_operand.hbm [shape: f32[16,32], index: 1, kind: input, shape index: {}]
  %s2 = inlined_call_operand.vmem [shape: f32[1,32], index: 2, kind: input, shape index: {}]
  %s3 = inlined_call_operand.vmem [shape: f32[1,32], index: 3, kind: input, shape index: {}]
  %s4 = inlined_call_operand.hbm [shape: f32[16,32], index: 4, kind: output, shape index: {}]
  %s5 = sld [smem:[#allocation0]]
  $region34: #{residual_layer_norm.1} parent=0
    _
  %s7 = ssub.s32 1, %s5
  %s8 = scalar_select 0, %s7, %s5
  $region1: #{residual_layer_norm.1} parent=0
    #allocation2 [shape = 'u8[8192]{0}', space=vmem, size = 0x2000, scoped, tag = 'input window, operand 0, single buffered']
    #allocation3 [shape = 's32[1]{0}', space=sflag, size = 0x4, scoped, tag = 'scoped memory for residual_layer_norm.1']
    #allocation4 [shape = 's32[1]{0}', space=sflag, size = 0x4, scoped, tag = 'scoped memory for residual_layer_norm.1']
    #allocation5 [shape = 'u8[8192]{0}', space=vmem, size = 0x2000, scoped, tag = 'input window, operand 1, single buffered']
    #allocation6 [shape = 's32[1]{0}', space=sflag, size = 0x4, scoped, tag = 'scoped memory for residual_layer_norm.1']
    #allocation7 [shape = 'u8[8192]{0}', space=vmem, size = 0x2000, scoped, tag = 'output window, operand 0, single buffered']
    %9 = vsyncpa [#allocation3], 0
    %10 = vsyncpa [#allocation6], 0
    %11 = vsyncpa [#allocation4], 0
    // Predicated region
    $region2: #{residual_layer_norm.1} parent=1 // pred_check
      _
    $region3: #{residual_layer_norm.1} parent=1 // pred_check_branch
      %13 = sbr.rel (0) target = $region5
    $region4: #{residual_layer_norm.1} parent=1 // pred_region
      %15 = vsyncadd [#allocation3], 0
      %s16 = sshll.u32 %s0, 4
      %s17 = int_to_ptr.hbm [resolvable:$true] %s16
      %s18 = sshll.u32 [#allocation2], 4
      %s19 = int_to_ptr.vmem [resolvable:$true] %s18
      %24 = dma.hbm_to_vmem [thread:$0]  %s17, 256, %s19, [#allocation3], 128, 128, 8
    $region5: #{residual_layer_norm.1} parent=1 // pred_fallthru
      _
    // Predicated region
    $region6: #{residual_layer_norm.1} parent=1 // pred_check
      _
    $region7: #{residual_layer_norm.1} parent=1 // pred_check_branch
      %26 = sbr.rel (0) target = $region9
    $region8: #{residual_layer_norm.1} parent=1 // pred_region
      %28 = vsyncadd [#allocation6], 0
      %s29 = sshll.u32 %s1, 4
      %s30 = int_to_ptr.hbm [resolvable:$true] %s29
      %s31 = sshll.u32 [#allocation5], 4
      %s32 = int_to_ptr.vmem [resolvable:$true] %s31
      %37 = dma.hbm_to_vmem [thread:$0]  %s30, 256, %s32, [#allocation6], 128, 128, 8
    $region9: #{residual_layer_norm.1} parent=1 // pred_fallthru
      _
    // Predicated region
    $region10: #{residual_layer_norm.1} parent=1 // pred_check
      _
    $region11: #{residual_layer_norm.1} parent=1 // pred_check_branch
      %39 = sbr.rel (0) target = $region13
    $region12: #{residual_layer_norm.1} parent=1 // pred_region
      _
    $region13: #{residual_layer_norm.1} parent=1 // pred_fallthru
      _
    // Predicated region
    $region14: #{residual_layer_norm.1} parent=1 // pred_check
      _
    $region15: #{residual_layer_norm.1} parent=1 // pred_check_branch
      %41 = sbr.rel (0) target = $region17
    $region16: #{residual_layer_norm.1} parent=1 // pred_region
      _
    $region17: #{residual_layer_norm.1} parent=1 // pred_fallthru
      _
    // Predicated region
    $region18: #{residual_layer_norm.1} parent=1 // pred_check
      _
    $region19: #{residual_layer_norm.1} parent=1 // pred_check_branch
      %43 = sbr.rel (0) target = $region21
    $region20: #{residual_layer_norm.1} parent=1 // pred_region
      %45 = dma.done [#allocation3], 256
    $region21: #{residual_layer_norm.1} parent=1 // pred_fallthru
      _
    // Predicated region
    $region22: #{residual_layer_norm.1} parent=1 // pred_check
      _
    $region23: #{residual_layer_norm.1} parent=1 // pred_check_branch
      %47 = sbr.rel (0) target = $region25
    $region24: #{residual_layer_norm.1} parent=1 // pred_region
      %49 = dma.done [#allocation6], 256
    $region25: #{residual_layer_norm.1} parent=1 // pred_fallthru
      _
    %v50 = vld [vmem:[#allocation2] sm:$0xff]
    %v51 = vld [vmem:[#allocation2 + $0x8] sm:$0xff]
    %v52 = vld [vmem:[#allocation5] sm:$0xff]
    %v53 = vld [vmem:[#allocation5 + $0x8] sm:$0xff]
    %v54 = vadd.f32 %v50, %v52
    %v55 = vadd.f32 %v51, %v53
    %vm56 = vcmask 261120
    %v57 = vsel %vm56, %v54, 0.0
    %58 = vadd.xlane.f32.xlu0 %v57
    %v59 = vpop.xlane.xlu0 %58
    %v60 = vsel %vm56, %v55, 0.0
    %61 = vadd.xlane.f32.xlu0 %v60
    %v62 = vpop.xlane.xlu0 %61
    %v63 = vmul.f32 %v59, 0.03125
    %v64 = vmul.f32 %v62, 0.03125
    %v65 = vsub.f32 %v54, %v63
    %v66 = vsub.f32 %v55, %v64
    %v67 = vmul.f32 %v65, %v65
    %v68 = vmul.f32 %v66, %v66
    %v69 = vsel %vm56, %v67, 0.0
    %70 = vadd.xlane.f32.xlu0 %v69
    %v71 = vpop.xlane.xlu0 %70
    %v72 = vsel %vm56, %v68, 0.0
    %73 = vadd.xlane.f32.xlu0 %v72
    %v74 = vpop.xlane.xlu0 %73
    %v75 = vmul.f32 %v71, 0.03125
    %v76 = vmul.f32 %v74, 0.03125
    %v77 = vadd.f32 %v75, 1e-05
    %v78 = vadd.f32 %v76, 1e-05
    %v79 = vrsqrt.pop %v77
    %v80 = vmul.f32 %v79, %v77
    %v81 = vmul.f32 %v80, %v79
    %v82 = vmul.f32 0.5, %v81
    %v83 = vsub.f32 1.5, %v82
    %v84 = vmul.f32 %v79, %v83
    %vm85 = vweird.f32 %v77
    %vm86 = vweird.f32 %v79
    %vm87 = vmor %vm85, %vm86
    %v88 = vsel %vm87, %v79, %v84
    %v89 = vrsqrt.pop %v78
    %v90 = vmul.f32 %v89, %v78
    %v91 = vmul.f32 %v90, %v89
    %v92 = vmul.f32 0.5, %v91
    %v93 = vsub.f32 1.5, %v92
    %v94 = vmul.f32 %v89, %v93
    %vm95 = vweird.f32 %v78
    %vm96 = vweird.f32 %v89
    %vm97 = vmor %vm95, %vm96
    %v98 = vsel %vm97, %v89, %v94
    %v99 = vld [vmem:[%s2] sm:$0x1]
    %v100 = vld [vmem:[%s3] sm:$0x1]
    %v101 = vmul.f32 %v65, %v88
    %v102 = vmul.f32 %v66, %v98
    %v104 = vperm.slane %v99, 0
    %v106 = vmul.f32 %v101, %v104
    %v107 = vmul.f32 %v102, %v104
    %v109 = vperm.slane %v100, 0
    %v111 = vadd.f32 %v106, %v109
    %v112 = vadd.f32 %v107, %v109
    %113 = vst.msk [vmem:[#allocation7] sm:$0xff] %vm56, %v111
    %114 = vst.msk [vmem:[#allocation7 + $0x8] sm:$0xff] %vm56, %v112
    // Predicated region
    $region26: #{residual_layer_norm.1} parent=1 // pred_check
      _
    $region27: #{residual_layer_norm.1} parent=1 // pred_check_branch
      %116 = sbr.rel (0) target = $region29
    $region28: #{residual_layer_norm.1} parent=1 // pred_region
      %118 = vsyncadd [#allocation4], 0
      %s119 = sshll.u32 [#allocation7], 4
      %s120 = int_to_ptr.vmem [resolvable:$true] %s119
      %s121 = sshll.u32 %s4, 4
      %s122 = int_to_ptr.hbm [resolvable:$true] %s121
      %127 = dma.vmem_to_hbm [thread:$0]  %s120, 256, %s122, [#allocation4], 128, 128, 8
    $region29: #{residual_layer_norm.1} parent=1 // pred_fallthru
      _
    // Predicated region
    $region30: #{residual_layer_norm.1} parent=1 // pred_check
      _
    $region31: #{residual_layer_norm.1} parent=1 // pred_check_branch
      %129 = sbr.rel (0) target = $region33
    $region32: #{residual_layer_norm.1} parent=1 // pred_region
      %131 = dma.done [#allocation4], 256
    $region33: #{residual_layer_norm.1} parent=1 // pred_fallthru
      _
    %132 = vsyncpa [#allocation3], 1
    %133 = vsyncpa [#allocation6], 1
    %134 = vsyncpa [#allocation4], 1

</llo_original>
